<compile_context>
chip_gen: v5e
topology: v5e:2x2
jax: 0.10.0
libtpu: 0.0.40
codegen_flags: <defaults>
</compile_context>

<pallas_src>
import math

import jax
import jax.numpy as jnp
from jax.experimental import pallas as pl
from jax.experimental.pallas import tpu as pltpu


def _box_embed_kernel(x_ref, w_ref, b_ref, o_ref):
    # x_ref: (TRP, kin)    packed boxes (g original rows per packed row), f32
    # w_ref: (kin, out_w)  block-diagonal weight (resident across grid steps)
    # b_ref: (1,   out_w)  tiled bias (resident)
    # o_ref: (TRP, out_w)  lane-dense output tile (f32 or bf16)
    y = jnp.dot(x_ref[...], w_ref[...], preferred_element_type=jnp.float32)
    o_ref[...] = jnp.maximum(y + b_ref[...], 0.0).astype(o_ref.dtype)  # ReLU


def _round_up(x, m):
    return ((x + m - 1) // m) * m


def _lcm(a, b):
    return a * b // math.gcd(a, b)


def pie_feature_extractor(boxes, weight, bias, *, out_dtype=jnp.float32):
    """ReLU(boxes @ weight.T + bias), broadcasting over leading dims.

    boxes:  (..., 4) float
    weight: (hidden, 4) float   (PyTorch nn.Linear layout)
    bias:   (hidden,)  float
    out_dtype: f32 matches the PyTorch module exactly; bf16 halves the dominant
      HBM write traffic if the consumer tolerates it (compute stays in f32).
    """
    hidden, in_features = weight.shape
    lead_shape = boxes.shape[:-1]
    rows = math.prod(lead_shape) if lead_shape else 1

    if rows == 0:  # zero-sized leading dims: nothing to launch
        return jnp.zeros((*lead_shape, hidden), dtype=out_dtype)

    x2d = boxes.reshape(rows, in_features).astype(jnp.float32)
    w_t = weight.T.astype(jnp.float32)                  # (4, hidden)
    b1d = bias.astype(jnp.float32).reshape(1, hidden)

    # --- generation detection (affects tiling/VMEM budgets only) -------------
    kind = jax.devices()[0].device_kind.lower()
    is_v5 = "v5" in kind
    is_v6 = "v6" in kind
    is_v7 = ("v7" in kind) or ("7x" in kind)

    # --- packing factor g -----------------------------------------------------
    def _weight_fits(c):  # keep the block-diagonal weight comfortably in VMEM
        return (c * in_features) * (c * hidden) * 4 <= (4 << 20)

    g_out = 128 // math.gcd(hidden, 128)                # lane-dense output rows
    cands = []
    if not is_v5:
        # Also make the input lane-dense (kin multiple of 128). The 4 MiB weight
        # cap naturally bounds the extra MXU flops; skipped on v5e (weak f32 MXU).
        g_in = _lcm(g_out, 128 // math.gcd(in_features, 128))
        if _weight_fits(g_in):
            cands.append(g_in)
    if _weight_fits(g_out):
        cands.append(g_out)
    if not cands:
        cands = [1]
    # Prefer a g that divides rows (no pad / no output-slice copies at all);
    # otherwise fall back to the smallest viable g plus a small row pad.
    g = next((c for c in cands if rows % c == 0), cands[-1])

    kin = g * in_features
    out_w = g * hidden

    if g > 1:
        # Block-diagonal weight: packed (g rows -> one row) matmul is exactly
        # the original Linear applied to each original row independently.
        w_big = jnp.kron(jnp.eye(g, dtype=jnp.float32), w_t)   # (kin, out_w)
        b_big = jnp.tile(b1d, (1, g))                           # (1, out_w)
    else:
        w_big, b_big = w_t, b1d

    # Pad rows to a multiple of g only when unavoidable.
    rows_g = _round_up(rows, g)
    if rows_g != rows:
        x2d = jnp.pad(x2d, ((0, rows_g - rows), (0, 0)))
    rp = rows_g // g
    x_packed = x2d.reshape(rp, kin)          # contiguous reshape: free in XLA

    # --- tile sizing (lane padding counted) -----------------------------------
    out_itemsize = jnp.dtype(out_dtype).itemsize
    bytes_per_packed_row = (_round_up(kin, 128) * 4
                            + _round_up(out_w, 128) * out_itemsize)
    if is_v7:
        target_tile_bytes = 6 << 20          # 64 MiB VMEM: 2x(in+out)+W <= ~16 MiB
        vmem_limit = 48 << 20
    elif is_v5 or is_v6:
        target_tile_bytes = 8 << 20          # 128 MiB VMEM
        vmem_limit = 64 << 20
    else:
        target_tile_bytes = 4 << 20          # unknown generation: conservative
        vmem_limit = 32 << 20

    trp_cap = max(8, (target_tile_bytes // bytes_per_packed_row) // 8 * 8)
    if rp <= 8:
        trp = rp                             # single full-extent block (tiny input)
    else:
        # >= 2 grid steps whenever possible so both v7x TensorCores get work
        # (negligible extra per-step overhead on single-core generations).
        trp = min(trp_cap, _round_up(-(-rp // 2), 8))
    grid = (pl.cdiv(rp, trp),)               # ragged last block handled by masking

    out_packed = pl.pallas_call(
        _box_embed_kernel,
        out_shape=jax.ShapeDtypeStruct((rp, out_w), out_dtype),
        grid_spec=pltpu.PrefetchScalarGridSpec(
            num_scalar_prefetch=0,
            grid=grid,
            in_specs=[
                pl.BlockSpec((trp, kin), lambda i: (i, 0)),     # row-tiled input
                pl.BlockSpec((kin, out_w), lambda i: (0, 0)),   # resident weight
                pl.BlockSpec((1, out_w), lambda i: (0, 0)),     # resident bias
            ],
            out_specs=pl.BlockSpec((trp, out_w), lambda i: (i, 0)),
        ),
        compiler_params=pltpu.CompilerParams(
            dimension_semantics=("parallel",),
            vmem_limit_bytes=vmem_limit,
        ),
        cost_estimate=pl.CostEstimate(
            flops=2 * rp * kin * out_w,
            transcendentals=0,
            bytes_accessed=(rp * kin * 4 + rp * out_w * out_itemsize
                            + kin * out_w * 4 + out_w * 4),
        ),
    )(x_packed, w_big, b_big)

    out = out_packed.reshape(rows_g, hidden)  # contiguous un-packing: free
    if rows_g != rows:                        # only when a pad was emitted
        out = out[:rows]
    return out.reshape(*lead_shape, hidden)


if __name__ == "__main__":
    key = jax.random.PRNGKey(0)
    k_x, k_w, k_b = jax.random.split(key, 3)

    batch, seq, hidden = 2, 8, 32
    # Deterministic synthetic parameters (shapes match nn.Linear(4, hidden)).
    boxes = jax.random.normal(k_x, (batch, seq, 4), dtype=jnp.float32)
    weight = jax.random.normal(k_w, (hidden, 4), dtype=jnp.float32) * 0.1
    bias = jax.random.normal(k_b, (hidden,), dtype=jnp.float32) * 0.1

    # Reference in plain JAX (same math as PyTorch: ReLU(x @ W^T + b)).
    ref = jnp.maximum(jnp.einsum("bsk,hk->bsh", boxes, weight) + bias, 0.0)

    # f32 output (exact module semantics).
    out = jax.block_until_ready(pie_feature_extractor(boxes, weight, bias))
    assert out.shape == (batch, seq, hidden)
    assert out.dtype == jnp.float32
    assert jnp.allclose(out, ref, atol=1e-5, rtol=1e-5)

    # bf16 output path (halves HBM write traffic for tolerant consumers).
    out_bf16 = jax.block_until_ready(
        pie_feature_extractor(boxes, weight, bias, out_dtype=jnp.bfloat16))
    assert out_bf16.dtype == jnp.bfloat16
    assert jnp.allclose(out_bf16.astype(jnp.float32), ref, atol=3e-2, rtol=3e-2)

    print("KERNEL_OK")
</pallas_src>

<mosaic_0001>
module attributes {stable_mosaic.version = 11 : i64} {
  func.func @_box_embed_kernel(%arg0: i32, %arg1: memref<4x16xf32, #tpu.memory_space<vmem>>, %arg2: memref<16x128xf32, #tpu.memory_space<vmem>>, %arg3: memref<1x128xf32, #tpu.memory_space<vmem>>, %arg4: memref<4x128xf32, #tpu.memory_space<vmem>>) attributes {dimension_semantics = [#tpu.dimension_semantics<parallel>], iteration_bounds = array<i64: 1>, scalar_prefetch = 0 : i64, scratch_operands = 0 : i64, tpu.core_type = #tpu.core_type<tc>, window_params = [{transform_indices = @transform_0, window_bounds = array<i64: 4, 16>}, {pipeline_mode = #tpu.pipeline_mode<synchronous>, transform_indices = @transform_1, window_bounds = array<i64: 16, 128>}, {pipeline_mode = #tpu.pipeline_mode<synchronous>, transform_indices = @transform_2, window_bounds = array<i64: 1, 128>}, {transform_indices = @transform_3, window_bounds = array<i64: 4, 128>}]} {
    %c0 = arith.constant 0 : index
    %c0_0 = arith.constant 0 : index
    %0 = vector.load %arg1[%c0, %c0_0] : memref<4x16xf32, #tpu.memory_space<vmem>>, vector<4x16xf32>
    %c0_1 = arith.constant 0 : index
    %c0_2 = arith.constant 0 : index
    %1 = vector.load %arg2[%c0_1, %c0_2] : memref<16x128xf32, #tpu.memory_space<vmem>>, vector<16x128xf32>
    %cst = arith.constant dense<0.000000e+00> : vector<4x128xf32>
    %2 = tpu.matmul %0, %1, %cst {dimension_numbers = #tpu.dot_dimension_numbers<[1], [0], [0], [1], [0, 0, 1, 1], [], []>} : vector<4x16xf32>, vector<16x128xf32>, vector<4x128xf32> -> vector<4x128xf32>
    %c0_3 = arith.constant 0 : index
    %c0_4 = arith.constant 0 : index
    %3 = vector.load %arg3[%c0_3, %c0_4] : memref<1x128xf32, #tpu.memory_space<vmem>>, vector<1x128xf32>
    %4 = vector.broadcast %3 : vector<1x128xf32> to vector<4x128xf32>
    %5 = arith.addf %2, %4 : vector<4x128xf32>
    %cst_5 = arith.constant 0.000000e+00 : f32
    %6 = vector.broadcast %cst_5 : f32 to vector<4x128xf32>
    %7 = arith.maximumf %5, %6 : vector<4x128xf32>
    %c0_6 = arith.constant 0 : index
    %c0_7 = arith.constant 0 : index
    %8 = vector.load %arg4[%c0_6, %c0_7] : memref<4x128xf32, #tpu.memory_space<vmem>>, vector<4x128xf32>
    tpu.vector_store %arg4[%c0_6, %c0_7], %7 {strides = array<i32>} : memref<4x128xf32, #tpu.memory_space<vmem>>, vector<4x128xf32>,
    return
  }
  func.func @transform_0(%arg0: i32) -> (i32, i32) {
    %c0_i32 = arith.constant 0 : i32
    %c0_i32_0 = arith.constant 0 : i32
    return %arg0, %c0_i32 : i32, i32
  }
  func.func @transform_1(%arg0: i32) -> (i32, i32) {
    %c0_i32 = arith.constant 0 : i32
    %c0_i32_0 = arith.constant 0 : i32
    %c0_i32_1 = arith.constant 0 : i32
    return %c0_i32, %c0_i32_0 : i32, i32
  }
  func.func @transform_2(%arg0: i32) -> (i32, i32) {
    %c0_i32 = arith.constant 0 : i32
    %c0_i32_0 = arith.constant 0 : i32
    %c0_i32_1 = arith.constant 0 : i32
    return %c0_i32, %c0_i32_0 : i32, i32
  }
  func.func @transform_3(%arg0: i32) -> (i32, i32) {
    %c0_i32 = arith.constant 0 : i32
    %c0_i32_0 = arith.constant 0 : i32
    return %arg0, %c0_i32 : i32, i32
  }
}

</mosaic_0001>

<llo_original>
// kernel: tpu_custom_call.1
$region0: #{tpu_custom_call.1}
  #allocation0 [shape = 'u32[]', space=smem, size = 0x4, offset = 0x4, fixed_abs, tag = 'smem constant byte address 0x4 - core index']
  #allocation1 [shape = 'u32[72,128]{1,0:T(1,128)}', space=vmem, size = 0x9000, scoped, tag = 'internal scratch']
  %s0 = inlined_call_operand.hbm [shape: f32[4,16], index: 0, kind: input, shape index: {}]
  %s1 = inlined_call_operand.hbm [shape: f32[16,128], index: 1, kind: input, shape index: {}]
  %s2 = inlined_call_operand.vmem [shape: f32[1,128], index: 2, kind: input, shape index: {}]
  %s3 = inlined_call_operand.hbm [shape: f32[4,128], index: 3, kind: output, shape index: {}]
  %s4 = sld [smem:[#allocation0]]
  $region30: #{tpu_custom_call.1} parent=0
    _
  %s6 = ssub.s32 1, %s4
  %s7 = scalar_select 0, %s6, %s4
  $region1: #{tpu_custom_call.1} parent=0
    #allocation2 [shape = 'u8[2048]{0}', space=vmem, size = 0x800, scoped, tag = 'input window, operand 0, single buffered']
    #allocation3 [shape = 's32[1]{0}', space=sflag, size = 0x4, scoped, tag = 'scoped memory for tpu_custom_call.1']
    #allocation4 [shape = 's32[1]{0}', space=sflag, size = 0x4, scoped, tag = 'scoped memory for tpu_custom_call.1']
    #allocation5 [shape = 'u8[8192]{0}', space=vmem, size = 0x2000, scoped, tag = 'input window, operand 1, single buffered']
    #allocation6 [shape = 's32[1]{0}', space=sflag, size = 0x4, scoped, tag = 'scoped memory for tpu_custom_call.1']
    #allocation7 [shape = 'u8[2048]{0}', space=vmem, size = 0x800, scoped, tag = 'output window, operand 0, single buffered']
    %8 = vsyncpa [#allocation3], 0
    %9 = vsyncpa [#allocation6], 0
    %10 = vsyncpa [#allocation4], 0
    // Predicated region
    $region2: #{tpu_custom_call.1} parent=1 // pred_check
      _
    $region3: #{tpu_custom_call.1} parent=1 // pred_check_branch
      %12 = sbr.rel (0) target = $region5
    $region4: #{tpu_custom_call.1} parent=1 // pred_region
      %14 = vsyncadd [#allocation3], 0
      %s16 = sshll.u32 %s0, 4
      %s17 = int_to_ptr.hbm [resolvable:$true] %s16
      %s18 = sshll.u32 [#allocation2], 4
      %s19 = int_to_ptr.vmem [resolvable:$true] %s18
      %21 = dma.hbm_to_vmem [thread:$0]  %s17, 64, %s19, [#allocation3]
    $region5: #{tpu_custom_call.1} parent=1 // pred_fallthru
      _
    // Predicated region
    $region6: #{tpu_custom_call.1} parent=1 // pred_check
      _
    $region7: #{tpu_custom_call.1} parent=1 // pred_check_branch
      %23 = sbr.rel (0) target = $region9
    $region8: #{tpu_custom_call.1} parent=1 // pred_region
      %25 = vsyncadd [#allocation6], 0
      %s26 = sshll.u32 %s1, 4
      %s27 = int_to_ptr.hbm [resolvable:$true] %s26
      %s28 = sshll.u32 [#allocation5], 4
      %s29 = int_to_ptr.vmem [resolvable:$true] %s28
      %34 = dma.hbm_to_vmem [thread:$0]  %s27, 256, %s29, [#allocation6], 128, 128, 8
    $region9: #{tpu_custom_call.1} parent=1 // pred_fallthru
      _
    // Predicated region
    $region10: #{tpu_custom_call.1} parent=1 // pred_check
      _
    $region11: #{tpu_custom_call.1} parent=1 // pred_check_branch
      %36 = sbr.rel (0) target = $region13
    $region12: #{tpu_custom_call.1} parent=1 // pred_region
      _
    $region13: #{tpu_custom_call.1} parent=1 // pred_fallthru
      _
    // Predicated region
    $region14: #{tpu_custom_call.1} parent=1 // pred_check
      _
    $region15: #{tpu_custom_call.1} parent=1 // pred_check_branch
      %38 = sbr.rel (0) target = $region17
    $region16: #{tpu_custom_call.1} parent=1 // pred_region
      %40 = dma.done [#allocation3], 64
    $region17: #{tpu_custom_call.1} parent=1 // pred_fallthru
      _
    // Predicated region
    $region18: #{tpu_custom_call.1} parent=1 // pred_check
      _
    $region19: #{tpu_custom_call.1} parent=1 // pred_check_branch
      %42 = sbr.rel (0) target = $region21
    $region20: #{tpu_custom_call.1} parent=1 // pred_region
      %44 = dma.done [#allocation6], 256
    $region21: #{tpu_custom_call.1} parent=1 // pred_fallthru
      _
    %v45 = vld [vmem:[#allocation2] sm:$0xf]
    %v46 = vld [vmem:[#allocation5] sm:$0xff]
    %v47 = vld [vmem:[#allocation5 + $0x8] sm:$0xff]
    %v48 = vld [vmem:[%s2] sm:$0x1]
    %v50 = vperm.slane %v48, 0
    %vm52 = vcmask 130048
    %v54 = vsel %vm52, %v45, 0
    %56 = vmatpush.msra.mxu0 0.0
    %57 = vmatpush.msra.mxu0 0.0
    %58 = vmatpush.msra.mxu0 0.0
    %59 = vmatpush.msra.mxu0 0.0
    %60 = vmatpush.msra.mxu0 0.0
    %61 = vmatpush.msra.mxu0 0.0
    %62 = vmatpush.msra.mxu0 0.0
    %63 = vmatpush.msra.mxu0 0.0
    %64 = vmatpush.msra.mxu0 0.0
    %65 = vmatpush.msra.mxu0 0.0
    %66 = vmatpush.msra.mxu0 0.0
    %67 = vmatpush.msra.mxu0 0.0
    %68 = vmatpush.msra.mxu0 0.0
    %69 = vmatpush.msra.mxu0 0.0
    %70 = vmatpush.msra.mxu0 %v47
    %71 = vmatpush.msra.mxu0 %v46
    %72 = vmatmul.f32.gmra.mxu0 %v54
    %v73 = vpop.f32.mrf.mxu0
    %v74 = vadd.f32 %v50, %v73
    %75 = vdwg.mxu0
    %v76 = vmax.f32 %v74, 0.0
    %77 = vst [vmem:[#allocation7] sm:$0xf] %v76
    // Predicated region
    $region22: #{tpu_custom_call.1} parent=1 // pred_check
      _
    $region23: #{tpu_custom_call.1} parent=1 // pred_check_branch
      %79 = sbr.rel (0) target = $region25
    $region24: #{tpu_custom_call.1} parent=1 // pred_region
      %81 = vsyncadd [#allocation4], 0
      %s83 = sshll.u32 [#allocation7], 4
      %s84 = int_to_ptr.vmem [resolvable:$true] %s83
      %s85 = sshll.u32 %s3, 4
      %s86 = int_to_ptr.hbm [resolvable:$true] %s85
      %88 = dma.vmem_to_hbm [thread:$0]  %s84, 64, %s86, [#allocation4]
    $region25: #{tpu_custom_call.1} parent=1 // pred_fallthru
      _
    // Predicated region
    $region26: #{tpu_custom_call.1} parent=1 // pred_check
      _
    $region27: #{tpu_custom_call.1} parent=1 // pred_check_branch
      %90 = sbr.rel (0) target = $region29
    $region28: #{tpu_custom_call.1} parent=1 // pred_region
      %92 = dma.done [#allocation4], 64
    $region29: #{tpu_custom_call.1} parent=1 // pred_fallthru
      _
    %93 = vsyncpa [#allocation3], 1
    %94 = vsyncpa [#allocation6], 1
    %95 = vsyncpa [#allocation4], 1

</llo_original>
